<compile_context>
chip_gen: v7x
topology: tpu7x:2x2x1
jax: 0.10.0
libtpu: 0.0.40
codegen_flags: <defaults>
</compile_context>

<pallas_src>
import jax
import jax.numpy as jnp
from jax import lax
from jax.experimental import pallas as pl
from jax.experimental.pallas import tpu as pltpu

EPS = 1e-3  # matches eps=0.001 in the module


def point_t_kernel(sb_ref, pts_ref, out_ref):
    """sb_ref: (4,) SMEM [scale0, bias0, scale1, bias1]; pts/out: (BR, 128)."""
    pts = pts_ref[...]                                    # (BR, 128) f32

    lane = lax.broadcasted_iota(jnp.int32, pts.shape, 1)

    # Bring each point's flag (lane 4k) onto its z lane (lane 4k + 3).  The
    # lane-iota is rolled through the same primitive, so per output lane we
    # know which candidate actually originated from a flag lane (lane % 4 == 0)
    # -- correct regardless of the rotate-direction convention.
    src_a = pltpu.roll(lane, shift=3, axis=1)
    cand_a = pltpu.roll(pts, shift=3, axis=1)
    cand_b = pltpu.roll(pts, shift=128 - 3, axis=1)
    flag_at_z = jnp.where(src_a % 4 == 0, cand_a, cand_b)

    sel = flag_at_z != 0.0                                # dataset 1 iff flag != 0
    scale = jnp.where(sel, sb_ref[2], sb_ref[0])
    bias = jnp.where(sel, sb_ref[3], sb_ref[1])
    z_hat = pts * scale + bias                            # only z lanes are kept

    is_z = lane % 4 == 3
    out_ref[...] = jnp.where(is_z, z_hat, pts)


def _fold_bn(bn_params, eps=EPS):
    """(2, 4) rows = [mean, var, gamma, beta] -> flat (4,) [s0, b0, s1, b1]."""
    mean, var = bn_params[:, 0], bn_params[:, 1]
    gamma, beta = bn_params[:, 2], bn_params[:, 3]
    scale = gamma * lax.rsqrt(var + eps)
    bias = beta - mean * scale
    return jnp.stack([scale[0], bias[0], scale[1], bias[1]]).astype(jnp.float32)


def point_t_forward(points, bn_params, *, block_rows=2048):
    """points: (N, 4) f32, bn_params: (2, 4) f32 -> (N, 4) f32."""
    n, c = points.shape
    assert c == 4
    total = n * 4
    rows = pl.cdiv(total, 128)

    g = max(1, pl.cdiv(rows, block_rows))       # grid steps
    br = ((pl.cdiv(rows, g) + 7) // 8) * 8      # block rows (multiple of 8)
    rows_pad = g * br

    flat = points.reshape(-1)                   # free: row-major (N,4) -> (4N,)
    pad = rows_pad * 128 - total
    if pad:
        flat = jnp.pad(flat, (0, pad))
    slab = flat.reshape(rows_pad, 128)          # lane-dense, no data movement

    sb = _fold_bn(bn_params)

    out_slab = pl.pallas_call(
        point_t_kernel,
        out_shape=jax.ShapeDtypeStruct((rows_pad, 128), points.dtype),
        grid=(g,),
        in_specs=[
            pl.BlockSpec(memory_space=pltpu.MemorySpace.SMEM),  # (4,) folded BN
            pl.BlockSpec((br, 128), lambda i: (i, 0)),
        ],
        out_specs=pl.BlockSpec((br, 128), lambda i: (i, 0)),
        compiler_params=pltpu.CompilerParams(
            dimension_semantics=("parallel",)),
        # NOTE: if the caller can donate `points`, add
        # input_output_aliases={1: 0} to rewrite the buffer in place.
    )(sb, slab)

    out = out_slab.reshape(-1)
    if pad:
        out = out[:total]
    return out.reshape(n, 4)


def point_t_reference(points, bn_params):
    flag = points[:, 0:1]
    z = points[:, 3:4]
    sel = flag != 0.0
    mean = jnp.where(sel, bn_params[1, 0], bn_params[0, 0])
    var = jnp.where(sel, bn_params[1, 1], bn_params[0, 1])
    gamma = jnp.where(sel, bn_params[1, 2], bn_params[0, 2])
    beta = jnp.where(sel, bn_params[1, 3], bn_params[0, 3])
    z_hat = (z - mean) * lax.rsqrt(var + EPS) * gamma + beta
    return jnp.concatenate([points[:, 0:3], z_hat], axis=1)


if __name__ == "__main__":
    key = jax.random.PRNGKey(0)
    N = 1024                                   # number of points (batch=2 scenes)

    # points = [batch_idx/db_flag, x, y, z]; flag alternates 0 / 1
    flag_col = (jnp.arange(N) % 2).astype(jnp.float32)[:, None]
    coords = jax.random.normal(key, (N, 3), dtype=jnp.float32) * 10.0
    points = jnp.concatenate([flag_col, coords], axis=1)      # (N, 4)

    # deterministic per-dataset BN params: rows = [mean, var, gamma, beta]
    params = jnp.array([[0.10, 1.50, 1.20, 0.05],
                        [-0.20, 0.80, 0.90, -0.10]], dtype=jnp.float32)

    out = jax.block_until_ready(point_t_forward(points, params))
    ref = point_t_reference(points, params)
    assert out.shape == (N, 4) and out.dtype == jnp.float32
    assert jnp.allclose(out, ref, atol=1e-4, rtol=1e-5)

    # Ragged N (exercises the padded-tail path)
    N2 = 1000
    points2 = points[:N2]
    out2 = jax.block_until_ready(point_t_forward(points2, params))
    ref2 = point_t_reference(points2, params)
    assert out2.shape == (N2, 4)
    assert jnp.allclose(out2, ref2, atol=1e-4, rtol=1e-5)

    print("KERNEL_OK")
</pallas_src>

<mosaic_0001>
module attributes {stable_mosaic.version = 11 : i64} {
  func.func @point_t_kernel(%arg0: i32, %arg1: memref<4xf32, #tpu.memory_space<smem>>, %arg2: memref<32x128xf32, #tpu.memory_space<vmem>>, %arg3: memref<32x128xf32, #tpu.memory_space<vmem>>) attributes {dimension_semantics = [#tpu.dimension_semantics<parallel>], iteration_bounds = array<i64: 1>, scalar_prefetch = 0 : i64, scratch_operands = 0 : i64, tpu.core_type = #tpu.core_type<tc>, window_params = [{transform_indices = @transform_0, window_bounds = array<i64: 4>}, {transform_indices = @transform_1, window_bounds = array<i64: 32, 128>}, {transform_indices = @transform_2, window_bounds = array<i64: 32, 128>}]} {
    %c0 = arith.constant 0 : index
    %c0_0 = arith.constant 0 : index
    %0 = vector.load %arg2[%c0, %c0_0] : memref<32x128xf32, #tpu.memory_space<vmem>>, vector<32x128xf32>
    %1 = tpu.iota {dimensions = array<i32: 1>} : vector<32x128xi32>
    %c3_i32 = arith.constant 3 : i32
    %2 = tpu.dynamic_rotate %1 by %c3_i32 dim 1 : vector<32x128xi32>, i32 -> vector<32x128xi32>
    %c3_i32_1 = arith.constant 3 : i32
    %3 = tpu.dynamic_rotate %0 by %c3_i32_1 dim 1 : vector<32x128xf32>, i32 -> vector<32x128xf32>
    %c125_i32 = arith.constant 125 : i32
    %4 = tpu.dynamic_rotate %0 by %c125_i32 dim 1 : vector<32x128xf32>, i32 -> vector<32x128xf32>
    %c4_i32 = arith.constant 4 : i32
    %c0_i32 = arith.constant 0 : i32
    %5 = arith.cmpi eq, %c4_i32, %c0_i32 : i32
    %c1_i32 = arith.constant 1 : i32
    %6 = arith.select %5, %c1_i32, %c4_i32 : i32
    %7 = vector.broadcast %6 : i32 to vector<32x128xi32>
    %8 = arith.remsi %2, %7 : vector<32x128xi32>
    %c0_i32_2 = arith.constant 0 : i32
    %9 = vector.broadcast %c0_i32_2 : i32 to vector<32x128xi32>
    %10 = arith.cmpi ne, %8, %9 : vector<32x128xi32>
    %c0_i32_3 = arith.constant 0 : i32
    %11 = vector.broadcast %c0_i32_3 : i32 to vector<32x128xi32>
    %12 = arith.cmpi slt, %8, %11 : vector<32x128xi32>
    %c0_i32_4 = arith.constant 0 : i32
    %13 = arith.cmpi slt, %6, %c0_i32_4 : i32
    %14 = vector.broadcast %13 : i1 to vector<32x128xi1>
    %15 = vector.broadcast %14 : vector<32x128xi1> to vector<32x128xi1>
    %16 = arith.xori %12, %15 : vector<32x128xi1>
    %17 = arith.andi %16, %10 : vector<32x128xi1>
    %18 = vector.broadcast %6 : i32 to vector<32x128xi32>
    %19 = arith.addi %8, %18 : vector<32x128xi32>
    %20 = arith.select %17, %19, %8 : vector<32x128xi1>, vector<32x128xi32>
    %c0_i32_5 = arith.constant 0 : i32
    %21 = vector.broadcast %c0_i32_5 : i32 to vector<32x128xi32>
    %22 = arith.cmpi eq, %20, %21 : vector<32x128xi32>
    %23 = arith.select %22, %3, %4 : vector<32x128xi1>, vector<32x128xf32>
    %cst = arith.constant 0.000000e+00 : f32
    %24 = vector.broadcast %cst : f32 to vector<32x128xf32>
    %25 = arith.cmpf one, %23, %24 : vector<32x128xf32>
    %c2 = arith.constant 2 : index
    %26 = memref.load %arg1[%c2] : memref<4xf32, #tpu.memory_space<smem>>
    %c0_6 = arith.constant 0 : index
    %27 = memref.load %arg1[%c0_6] : memref<4xf32, #tpu.memory_space<smem>>
    %28 = vector.broadcast %26 : f32 to vector<32x128xf32>
    %29 = vector.broadcast %27 : f32 to vector<32x128xf32>
    %30 = arith.select %25, %28, %29 : vector<32x128xi1>, vector<32x128xf32>
    %c3 = arith.constant 3 : index
    %31 = memref.load %arg1[%c3] : memref<4xf32, #tpu.memory_space<smem>>
    %c1 = arith.constant 1 : index
    %32 = memref.load %arg1[%c1] : memref<4xf32, #tpu.memory_space<smem>>
    %33 = vector.broadcast %31 : f32 to vector<32x128xf32>
    %34 = vector.broadcast %32 : f32 to vector<32x128xf32>
    %35 = arith.select %25, %33, %34 : vector<32x128xi1>, vector<32x128xf32>
    %36 = arith.mulf %0, %30 : vector<32x128xf32>
    %37 = arith.addf %36, %35 : vector<32x128xf32>
    %c4_i32_7 = arith.constant 4 : i32
    %c0_i32_8 = arith.constant 0 : i32
    %38 = arith.cmpi eq, %c4_i32_7, %c0_i32_8 : i32
    %c1_i32_9 = arith.constant 1 : i32
    %39 = arith.select %38, %c1_i32_9, %c4_i32_7 : i32
    %40 = vector.broadcast %39 : i32 to vector<32x128xi32>
    %41 = arith.remsi %1, %40 : vector<32x128xi32>
    %c0_i32_10 = arith.constant 0 : i32
    %42 = vector.broadcast %c0_i32_10 : i32 to vector<32x128xi32>
    %43 = arith.cmpi ne, %41, %42 : vector<32x128xi32>
    %c0_i32_11 = arith.constant 0 : i32
    %44 = vector.broadcast %c0_i32_11 : i32 to vector<32x128xi32>
    %45 = arith.cmpi slt, %41, %44 : vector<32x128xi32>
    %c0_i32_12 = arith.constant 0 : i32
    %46 = arith.cmpi slt, %39, %c0_i32_12 : i32
    %47 = vector.broadcast %46 : i1 to vector<32x128xi1>
    %48 = vector.broadcast %47 : vector<32x128xi1> to vector<32x128xi1>
    %49 = arith.xori %45, %48 : vector<32x128xi1>
    %50 = arith.andi %49, %43 : vector<32x128xi1>
    %51 = vector.broadcast %39 : i32 to vector<32x128xi32>
    %52 = arith.addi %41, %51 : vector<32x128xi32>
    %53 = arith.select %50, %52, %41 : vector<32x128xi1>, vector<32x128xi32>
    %c3_i32_13 = arith.constant 3 : i32
    %54 = vector.broadcast %c3_i32_13 : i32 to vector<32x128xi32>
    %55 = arith.cmpi eq, %53, %54 : vector<32x128xi32>
    %56 = arith.select %55, %37, %0 : vector<32x128xi1>, vector<32x128xf32>
    %c0_14 = arith.constant 0 : index
    %c0_15 = arith.constant 0 : index
    %57 = vector.load %arg3[%c0_14, %c0_15] : memref<32x128xf32, #tpu.memory_space<vmem>>, vector<32x128xf32>
    tpu.vector_store %arg3[%c0_14, %c0_15], %56 {strides = array<i32>} : memref<32x128xf32, #tpu.memory_space<vmem>>, vector<32x128xf32>,
    return
  }
  func.func @transform_0(%arg0: i32) -> i32 {
    %c0_i32 = arith.constant 0 : i32
    %c0_i32_0 = arith.constant 0 : i32
    return %c0_i32 : i32
  }
  func.func @transform_1(%arg0: i32) -> (i32, i32) {
    %c0_i32 = arith.constant 0 : i32
    %c0_i32_0 = arith.constant 0 : i32
    return %arg0, %c0_i32 : i32, i32
  }
  func.func @transform_2(%arg0: i32) -> (i32, i32) {
    %c0_i32 = arith.constant 0 : i32
    %c0_i32_0 = arith.constant 0 : i32
    return %arg0, %c0_i32 : i32, i32
  }
}

</mosaic_0001>

<llo_original>
// kernel: tpu_custom_call.1
$region0: #{tpu_custom_call.1}
  #allocation0 [shape = 'u32[]', space=smem, size = 0x4, offset = 0x4, fixed_abs, tag = 'smem constant byte address 0x4 - core index']
  #allocation1 [shape = 'u32[144,128]{1,0:T(1,128)}', space=vmem, size = 0x12000, scoped, tag = 'internal scratch']
  %s0 = inlined_call_operand.hbm [shape: f32[4], index: 0, kind: input, shape index: {}]
  %s1 = inlined_call_operand.hbm [shape: f32[32,128], index: 1, kind: input, shape index: {}]
  %s2 = inlined_call_operand.hbm [shape: f32[32,128], index: 2, kind: output, shape index: {}]
  %s3 = sld [smem:[#allocation0]]
  $region26: #{tpu_custom_call.1} parent=0
    _
  %s5 = ssub.s32 1, %s3
  %s6 = scalar_select 0, %s5, %s3
  $region1: #{tpu_custom_call.1} parent=0
    #allocation2 [shape = 'u8[512]{0}', space=smem, size = 0x200, scoped, tag = 'input window, operand 0, single buffered']
    #allocation3 [shape = 's32[1]{0}', space=sflag, size = 0x4, scoped, tag = 'scoped memory for tpu_custom_call.1']
    #allocation4 [shape = 's32[1]{0}', space=sflag, size = 0x4, scoped, tag = 'scoped memory for tpu_custom_call.1']
    #allocation5 [shape = 's32[1]{0}', space=sflag, size = 0x4, scoped, tag = 'scoped memory for tpu_custom_call.1']
    #allocation6 [shape = 'u8[16384]{0}', space=vmem, size = 0x4000, scoped, tag = 'input window, operand 1, single buffered']
    #allocation7 [shape = 'u8[16384]{0}', space=vmem, size = 0x4000, scoped, tag = 'output window, operand 0, single buffered']
    %7 = vsyncpa [#allocation5], 0
    %8 = vsyncpa [#allocation3], 0
    %9 = vsyncpa [#allocation4], 0
    // Predicated region
    $region2: #{tpu_custom_call.1} parent=1 // pred_check
      _
    $region3: #{tpu_custom_call.1} parent=1 // pred_check_branch
      %11 = sbr.rel (0) target = $region5
    $region4: #{tpu_custom_call.1} parent=1 // pred_region
      %s13 = ssub.s32 16, 16
      %14 = vsyncadd [#allocation5], %s13
      %17 = dma.hbm_to_smem %s0, 16, [#allocation2], [#allocation5]
    $region5: #{tpu_custom_call.1} parent=1 // pred_fallthru
      _
    // Predicated region
    $region6: #{tpu_custom_call.1} parent=1 // pred_check
      _
    $region7: #{tpu_custom_call.1} parent=1 // pred_check_branch
      %19 = sbr.rel (0) target = $region9
    $region8: #{tpu_custom_call.1} parent=1 // pred_region
      %s21 = ssub.s32 512, 512
      %22 = vsyncadd [#allocation3], %s21
      %s23 = sshll.u32 [#allocation6], 4
      %s24 = int_to_ptr.vmem [resolvable:$true] %s23
      %29 = dma.hbm_to_vmem [thread:$0]  %s1, 512, %s24, [#allocation3], 128, 128, 8
    $region9: #{tpu_custom_call.1} parent=1 // pred_fallthru
      _
    // Predicated region
    $region10: #{tpu_custom_call.1} parent=1 // pred_check
      _
    $region11: #{tpu_custom_call.1} parent=1 // pred_check_branch
      %31 = sbr.rel (0) target = $region13
    $region12: #{tpu_custom_call.1} parent=1 // pred_region
      %32 = dma.done [#allocation5], 16
    $region13: #{tpu_custom_call.1} parent=1 // pred_fallthru
      _
    // Predicated region
    $region14: #{tpu_custom_call.1} parent=1 // pred_check
      _
    $region15: #{tpu_custom_call.1} parent=1 // pred_check_branch
      %34 = sbr.rel (0) target = $region17
    $region16: #{tpu_custom_call.1} parent=1 // pred_region
      %35 = dma.done [#allocation3], 512
    $region17: #{tpu_custom_call.1} parent=1 // pred_fallthru
      _
    %36 = sfence
    %v37 = vld [vmem:[#allocation6] sm:$0xff]
    %v38 = vld [vmem:[#allocation6 + $0x8] sm:$0xff]
    %v39 = vld [vmem:[#allocation6 + $0x10] sm:$0xff]
    %v40 = vld [vmem:[#allocation6 + $0x18] sm:$0xff]
    %v41 = vlaneseq
    %v42 = vand.u32 %v41, 127
    %43 = vrot.lane.b32.xlu0 %v42, 3
    %v44 = vpop.permute.xlu0 %43
    %45 = vrot.lane.b32.xlu0 %v37, 3
    %v46 = vpop.permute.xlu0 %45
    %47 = vrot.lane.b32.xlu0 %v38, 3
    %v48 = vpop.permute.xlu0 %47
    %49 = vrot.lane.b32.xlu0 %v39, 3
    %v50 = vpop.permute.xlu0 %49
    %51 = vrot.lane.b32.xlu0 %v40, 3
    %v52 = vpop.permute.xlu0 %51
    %53 = vrot.lane.b32.xlu0 %v37, 125
    %v54 = vpop.permute.xlu0 %53
    %55 = vrot.lane.b32.xlu0 %v38, 125
    %v56 = vpop.permute.xlu0 %55
    %57 = vrot.lane.b32.xlu0 %v39, 125
    %v58 = vpop.permute.xlu0 %57
    %59 = vrot.lane.b32.xlu0 %v40, 125
    %v60 = vpop.permute.xlu0 %59
    %vm61 = vcmp.lt.s32.totalorder %v44, 0
    %v62 = vsub.s32 0, %v44
    %v63 = vsel %vm61, %v62, %v44
    %v64 = vshrl.u32 %v63, 2
    %v65 = vand.u32 %v63, 3
    %v66 = vsub.s32 0, %v65
    %v67 = vsel %vm61, %v66, %v65
    %vm68 = vcmp.ne.s32.totalorder %v67, 0
    %vm69 = vcmp.lt.s32.totalorder %v67, 0
    %vm70 = vmand %vm69, %vm68
    %v71 = vadd.s32 %v67, 4
    %v72 = vsel %vm70, %v71, %v67
    %vm73 = vcmp.eq.s32.totalorder %v72, 0
    %v74 = vsel %vm73, %v46, %v54
    %v75 = vsel %vm73, %v48, %v56
    %v76 = vsel %vm73, %v50, %v58
    %v77 = vsel %vm73, %v52, %v60
    %vm78 = vcmp.ne.f32.partialorder %v74, 0.0
    %vm79 = vcmp.ne.f32.partialorder %v75, 0.0
    %vm80 = vcmp.ne.f32.partialorder %v76, 0.0
    %vm81 = vcmp.ne.f32.partialorder %v77, 0.0
    %s82 = sld [smem:[#allocation2 + $0x2]]
    %s83 = sld [smem:[#allocation2]]
    %v84 = vstv %s82
    %v85 = vstv %s83
    %v86 = vsel %vm78, %v84, %v85
    %v87 = vsel %vm79, %v84, %v85
    %v88 = vsel %vm80, %v84, %v85
    %v89 = vsel %vm81, %v84, %v85
    %s90 = sld [smem:[#allocation2 + $0x3]]
    %s91 = sld [smem:[#allocation2 + $0x1]]
    %v92 = vstv %s90
    %v93 = vstv %s91
    %v94 = vsel %vm78, %v92, %v93
    %v95 = vsel %vm79, %v92, %v93
    %v96 = vsel %vm80, %v92, %v93
    %v97 = vsel %vm81, %v92, %v93
    %v98 = vmul.f32 %v37, %v86
    %v99 = vmul.f32 %v38, %v87
    %v100 = vmul.f32 %v39, %v88
    %v101 = vmul.f32 %v40, %v89
    %v102 = vadd.f32 %v98, %v94
    %v103 = vadd.f32 %v99, %v95
    %v104 = vadd.f32 %v100, %v96
    %v105 = vadd.f32 %v101, %v97
    %vm106 = vcmp.lt.s32.totalorder %v42, 0
    %v107 = vsub.s32 0, %v42
    %v108 = vsel %vm106, %v107, %v42
    %v109 = vshrl.u32 %v108, 2
    %v110 = vand.u32 %v108, 3
    %v111 = vsub.s32 0, %v110
    %v112 = vsel %vm106, %v111, %v110
    %vm113 = vcmp.ne.s32.totalorder %v112, 0
    %vm114 = vcmp.lt.s32.totalorder %v112, 0
    %vm115 = vmand %vm114, %vm113
    %v116 = vadd.s32 %v112, 4
    %v117 = vsel %vm115, %v116, %v112
    %vm118 = vcmp.eq.s32.totalorder %v117, 3
    %v119 = vsel %vm118, %v102, %v37
    %v120 = vsel %vm118, %v103, %v38
    %v121 = vsel %vm118, %v104, %v39
    %v122 = vsel %vm118, %v105, %v40
    %123 = vst [vmem:[#allocation7] sm:$0xff] %v119
    %124 = vst [vmem:[#allocation7 + $0x8] sm:$0xff] %v120
    %125 = vst [vmem:[#allocation7 + $0x10] sm:$0xff] %v121
    %126 = vst [vmem:[#allocation7 + $0x18] sm:$0xff] %v122
    // Predicated region
    $region18: #{tpu_custom_call.1} parent=1 // pred_check
      _
    $region19: #{tpu_custom_call.1} parent=1 // pred_check_branch
      %128 = sbr.rel (0) target = $region21
    $region20: #{tpu_custom_call.1} parent=1 // pred_region
      %s130 = ssub.s32 512, 512
      %131 = vsyncadd [#allocation4], %s130
      %s132 = sshll.u32 [#allocation7], 4
      %s133 = int_to_ptr.vmem [resolvable:$true] %s132
      %138 = dma.vmem_to_hbm [thread:$0]  %s133, 512, %s2, [#allocation4], 128, 128, 8
    $region21: #{tpu_custom_call.1} parent=1 // pred_fallthru
      _
    // Predicated region
    $region22: #{tpu_custom_call.1} parent=1 // pred_check
      _
    $region23: #{tpu_custom_call.1} parent=1 // pred_check_branch
      %140 = sbr.rel (0) target = $region25
    $region24: #{tpu_custom_call.1} parent=1 // pred_region
      %141 = dma.done [#allocation4], 512
    $region25: #{tpu_custom_call.1} parent=1 // pred_fallthru
      _
    %142 = vsyncpa [#allocation3], 1
    %143 = vsyncpa [#allocation4], 1
    %144 = vsyncpa [#allocation5], 1

</llo_original>
